<compile_context>
chip_gen: v7x
topology: tpu7x:2x2x1
jax: 0.10.0
libtpu: 0.0.40
codegen_flags: <defaults>
</compile_context>

<pallas_src>
import functools
import math

import jax
import jax.numpy as jnp
from jax import lax
from jax.experimental import pallas as pl
from jax.experimental.pallas import tpu as pltpu


def _round_up(a, b):
    return ((a + b - 1) // b) * b


def _cdiv(a, b):
    return -(-a // b)


def _vmem_capacity_bytes():
    """Per-core VMEM capacity, with a conservative fallback (v7x = 64 MiB)."""
    try:
        info = pltpu.get_tpu_info()
        cap = getattr(info, "vmem_capacity_bytes", None)
        if cap:
            return int(cap)
    except Exception:
        pass
    return 64 << 20


def _wce_kernel(x_ref, t_ref, out_ref, *, w_sum, w_diff, uniform,
                valid_rows, mask_tail):
    """One (n, tile) grid step.

    x_ref, t_ref : (1, C, TR, 128) VMEM blocks (pixels dense on sublanes+lanes).
    out_ref      : (1, 1, OUT_R, 128) per-tile partial sum (lane-dense).
    """
    x = x_ref[0].astype(jnp.float32)   # (C, TR, 128)
    t = t_ref[0].astype(jnp.float32)   # (C, TR, 128)
    C, tr, _ = x.shape

    if C == 2:
        # Two-class soft-label CE via softplus: 1 exp + 1 log1p per pixel
        # (vs C exps + 1 log); EUP stays far off the critical path.
        d = x[1] - x[0]                                   # (TR, 128)
        sp_tail = jnp.log1p(jnp.exp(-jnp.abs(d)))
        ce = ((t[0] + t[1]) * sp_tail
              + t[0] * jnp.maximum(d, 0.0)
              + t[1] * jnp.maximum(-d, 0.0))
    else:
        # Generic log-softmax over the class axis (leading, un-tiled dim).
        m = jnp.max(x, axis=0, keepdims=True)             # (1, TR, 128)
        lse = jnp.log(jnp.sum(jnp.exp(x - m), axis=0, keepdims=True)) + m
        logp = x - lse                                    # (C, TR, 128)
        ce = -jnp.sum(t * logp, axis=0)                   # (TR, 128)

    if uniform:
        # weight factor is the constant (w0 + w1); folded in the wrapper.
        val = ce
    else:
        # t0*w0 + (1-t0)*w1 + t1*w1 + (1-t1)*w0 == (w0+w1) + (t0-t1)*(w0-w1)
        val = ce * (w_sum + (t[0] - t[1]) * w_diff)

    if mask_tail:
        # Ragged last tile: rows beyond the array extent hold unspecified data
        # (no HBM padding was done) -> zero them before the reduce.
        row0 = pl.program_id(1) * tr
        ridx = lax.broadcasted_iota(jnp.int32, (tr, 128), 0) + row0
        val = jnp.where(ridx < valid_rows, val, 0.0)

    if tr % 8 == 0:
        # (TR,128)->(TR//8,8,128) is tile-aligned (free); sum = TR//8-1 VPU adds.
        partial = val.reshape(tr // 8, 8, 128).sum(axis=0)    # (8, 128)
        out_ref[...] = partial.reshape(1, 1, 8, 128)
    else:
        # Tiny single full-extent block (tr == rows < 8): cheap sublane reduce.
        out_ref[...] = val.sum(axis=0).reshape(1, 1, 1, 128)


def weighted_cross_entropy_loss(x, target, weight=(1.0, 1.0), tile_rows=4096):
    """x, target: (N, C, H, W). Returns scalar loss (float32)."""
    N, C, H, W = x.shape
    assert target.shape == x.shape
    assert C >= 2, "weighting term uses classes 0 and 1"
    w0, w1 = float(weight[0]), float(weight[1])
    uniform = (w0 == w1)

    itx = jnp.dtype(x.dtype).itemsize
    itt = jnp.dtype(target.dtype).itemsize
    sub = max(8, 32 // min(itx, itt))          # sublane packing: 8 f32, 16 bf16

    HW = H * W
    rows = _cdiv(HW, 128)
    hw_pad = rows * 128

    # Contiguous reshape (no transpose). Lane padding is only needed when HW is
    # not 128-aligned (padded pixels have target == 0 -> contribute exactly 0);
    # the 128-aligned common case is a zero-copy reshape.
    x3 = x.reshape(N, C, HW)
    t3 = target.reshape(N, C, HW)
    if hw_pad != HW:
        pad = hw_pad - HW
        x3 = jnp.pad(x3, ((0, 0), (0, 0), (0, pad)))
        t3 = jnp.pad(t3, ((0, 0), (0, 0), (0, pad)))
    x4 = x3.reshape(N, C, rows, 128)
    t4 = t3.reshape(N, C, rows, 128)

    # --- Tile-size selection: per-generation VMEM budget, balanced tiles ---
    vmem_cap = _vmem_capacity_bytes()
    in_budget = min(int(vmem_cap * 0.4), 48 << 20)
    # both inputs, double-buffered, one row of 128 lanes across C classes:
    row_bytes = 2 * C * 128 * (itx + itt)
    max_tr = max(sub, ((in_budget // row_bytes) // sub) * sub)
    tr_cap = max(sub, (min(int(tile_rows), max_tr) // sub) * sub)

    n_tiles = _cdiv(rows, tr_cap)
    if n_tiles == 1 and N == 1 and rows > sub:
        n_tiles = 2                            # keep both v7x TensorCores busy
    if n_tiles == 1:
        tr = rows                              # full-extent block; no padding
    else:
        tr = _round_up(_cdiv(rows, n_tiles), sub)   # balanced, aligned tiles
        n_tiles = _cdiv(rows, tr)
        if tr >= rows:                         # degenerate: single full block
            tr, n_tiles = rows, 1
    mask_tail = (n_tiles * tr != rows)
    out_r = 8 if tr % 8 == 0 else 1

    in_block_bytes = 2 * C * tr * 128 * (itx + itt)   # double-buffered x + t
    vmem_limit = int(min(vmem_cap, max(16 << 20, in_block_bytes + (8 << 20))))

    kernel = functools.partial(
        _wce_kernel, w_sum=w0 + w1, w_diff=w0 - w1, uniform=uniform,
        valid_rows=rows, mask_tail=mask_tail)

    partials = pl.pallas_call(
        kernel,
        out_shape=jax.ShapeDtypeStruct((N, n_tiles, out_r, 128), jnp.float32),
        grid_spec=pltpu.PrefetchScalarGridSpec(
            num_scalar_prefetch=0,
            grid=(N, n_tiles),
            in_specs=[
                pl.BlockSpec((1, C, tr, 128), lambda n, i: (n, 0, i, 0)),
                pl.BlockSpec((1, C, tr, 128), lambda n, i: (n, 0, i, 0)),
            ],
            out_specs=pl.BlockSpec((1, 1, out_r, 128),
                                   lambda n, i: (n, i, 0, 0)),
        ),
        compiler_params=pltpu.CompilerParams(
            dimension_semantics=("parallel", "parallel"),
            vmem_limit_bytes=vmem_limit,
        ),
    )(x4, t4)

    total = jnp.sum(partials)
    if uniform:
        total = total * (w0 + w1)
    denom = float(N * C * H * W)               # reduce(mul, input.shape)
    return total / denom


def _reference_loss(x, target, weight=(1.0, 1.0)):
    """Pure-JAX reference mirroring the PyTorch forward."""
    w0, w1 = float(weight[0]), float(weight[1])
    logp = jax.nn.log_softmax(x.astype(jnp.float32), axis=1)
    ce = -jnp.sum(target.astype(jnp.float32) * logp, axis=1)      # (N, H, W)
    t0 = target[:, 0, :, :].astype(jnp.float32)
    t1 = target[:, 1, :, :].astype(jnp.float32)
    val = t0 * ce * w0 + (1 - t0) * ce * w1 + t1 * ce * w1 + (1 - t1) * ce * w0
    return val.sum() / math.prod(x.shape)


if __name__ == "__main__":
    key = jax.random.PRNGKey(0)
    k1, k2, k3, k4, k5, k6, k7, k8 = jax.random.split(key, 8)

    # Test 1: binary segmentation shapes, uniform weight, tiny single block.
    N, C, H, W = 2, 2, 16, 16
    x = jax.random.normal(k1, (N, C, H, W), dtype=jnp.float32)
    target = jax.nn.softmax(jax.random.normal(k2, (N, C, H, W), jnp.float32), axis=1)
    loss = jax.block_until_ready(weighted_cross_entropy_loss(x, target, (1.0, 1.0)))
    ref = jax.block_until_ready(_reference_loss(x, target, (1.0, 1.0)))
    assert jnp.allclose(loss, ref, rtol=1e-4, atol=1e-6), (loss, ref)

    # Test 2: generic-C path + non-uniform weights.
    x2 = jax.random.normal(k3, (2, 4, H, W), dtype=jnp.float32)
    target2 = jax.nn.softmax(jax.random.normal(k4, (2, 4, H, W), jnp.float32), axis=1)
    loss2 = jax.block_until_ready(weighted_cross_entropy_loss(x2, target2, (0.3, 0.7)))
    ref2 = jax.block_until_ready(_reference_loss(x2, target2, (0.3, 0.7)))
    assert jnp.allclose(loss2, ref2, rtol=1e-4, atol=1e-6), (loss2, ref2)

    # Test 3: ragged last tile (in-kernel mask path), N=1, multi-tile grid.
    x3 = jax.random.normal(k5, (1, 2, 48, 64), dtype=jnp.float32)    # rows=24
    target3 = jax.nn.softmax(jax.random.normal(k6, (1, 2, 48, 64), jnp.float32), axis=1)
    loss3 = jax.block_until_ready(
        weighted_cross_entropy_loss(x3, target3, (0.3, 0.7), tile_rows=16))
    ref3 = jax.block_until_ready(_reference_loss(x3, target3, (0.3, 0.7)))
    assert jnp.allclose(loss3, ref3, rtol=1e-4, atol=1e-6), (loss3, ref3)

    # Test 4: bf16 logits/targets (HBM bytes halved), f32 accumulation in-kernel.
    x4 = jax.random.normal(k7, (2, 2, 32, 32), dtype=jnp.float32).astype(jnp.bfloat16)
    target4 = jax.nn.softmax(
        jax.random.normal(k8, (2, 2, 32, 32), jnp.float32), axis=1).astype(jnp.bfloat16)
    loss4 = jax.block_until_ready(weighted_cross_entropy_loss(x4, target4, (0.3, 0.7)))
    ref4 = jax.block_until_ready(_reference_loss(x4, target4, (0.3, 0.7)))
    assert jnp.allclose(loss4, ref4, rtol=1e-4, atol=1e-5), (loss4, ref4)

    print("KERNEL_OK")
</pallas_src>

<mosaic_0001>
module attributes {stable_mosaic.version = 11 : i64} {
  func.func @_wce_kernel(%arg0: i32, %arg1: i32, %arg2: memref<1x2x2x128xf32, #tpu.memory_space<vmem>>, %arg3: memref<1x2x2x128xf32, #tpu.memory_space<vmem>>, %arg4: memref<1x1x1x128xf32, #tpu.memory_space<vmem>>) attributes {dimension_semantics = [#tpu.dimension_semantics<parallel>, #tpu.dimension_semantics<parallel>], iteration_bounds = array<i64: 2, 1>, scalar_prefetch = 0 : i64, scratch_operands = 0 : i64, tpu.core_type = #tpu.core_type<tc>, window_params = [{transform_indices = @transform_0, window_bounds = array<i64: 1, 2, 2, 128>}, {transform_indices = @transform_1, window_bounds = array<i64: 1, 2, 2, 128>}, {transform_indices = @transform_2, window_bounds = array<i64: 1, 1, 1, 128>}]} {
    %c0 = arith.constant 0 : index
    %c0_0 = arith.constant 0 : index
    %c0_1 = arith.constant 0 : index
    %c0_2 = arith.constant 0 : index
    %0 = vector.load %arg2[%c0, %c0_0, %c0_1, %c0_2] : memref<1x2x2x128xf32, #tpu.memory_space<vmem>>, vector<1x2x2x128xf32>
    %1 = vector.shape_cast %0 : vector<1x2x2x128xf32> to vector<2x2x128xf32>
    %c0_3 = arith.constant 0 : index
    %c0_4 = arith.constant 0 : index
    %c0_5 = arith.constant 0 : index
    %c0_6 = arith.constant 0 : index
    %2 = vector.load %arg3[%c0_3, %c0_4, %c0_5, %c0_6] : memref<1x2x2x128xf32, #tpu.memory_space<vmem>>, vector<1x2x2x128xf32>
    %3 = vector.shape_cast %2 : vector<1x2x2x128xf32> to vector<2x2x128xf32>
    %4 = vector.extract_strided_slice %1 {offsets = [1, 0, 0], sizes = [1, 2, 128], strides = [1, 1, 1]} : vector<2x2x128xf32> to vector<1x2x128xf32>
    %5 = vector.shape_cast %4 : vector<1x2x128xf32> to vector<2x128xf32>
    %6 = vector.extract_strided_slice %1 {offsets = [0, 0, 0], sizes = [1, 2, 128], strides = [1, 1, 1]} : vector<2x2x128xf32> to vector<1x2x128xf32>
    %7 = vector.shape_cast %6 : vector<1x2x128xf32> to vector<2x128xf32>
    %8 = arith.subf %5, %7 : vector<2x128xf32>
    %9 = math.absf %8 : vector<2x128xf32>
    %cst = arith.constant 0.000000e+00 : f32
    %10 = vector.broadcast %cst : f32 to vector<2x128xf32>
    %11 = arith.subf %10, %9 : vector<2x128xf32>
    %12 = math.exp %11 : vector<2x128xf32>
    %13 = math.log1p %12 : vector<2x128xf32>
    %14 = vector.extract_strided_slice %3 {offsets = [0, 0, 0], sizes = [1, 2, 128], strides = [1, 1, 1]} : vector<2x2x128xf32> to vector<1x2x128xf32>
    %15 = vector.shape_cast %14 : vector<1x2x128xf32> to vector<2x128xf32>
    %16 = vector.extract_strided_slice %3 {offsets = [1, 0, 0], sizes = [1, 2, 128], strides = [1, 1, 1]} : vector<2x2x128xf32> to vector<1x2x128xf32>
    %17 = vector.shape_cast %16 : vector<1x2x128xf32> to vector<2x128xf32>
    %18 = arith.addf %15, %17 : vector<2x128xf32>
    %19 = arith.mulf %18, %13 : vector<2x128xf32>
    %20 = vector.extract_strided_slice %3 {offsets = [0, 0, 0], sizes = [1, 2, 128], strides = [1, 1, 1]} : vector<2x2x128xf32> to vector<1x2x128xf32>
    %21 = vector.shape_cast %20 : vector<1x2x128xf32> to vector<2x128xf32>
    %cst_7 = arith.constant 0.000000e+00 : f32
    %22 = vector.broadcast %cst_7 : f32 to vector<2x128xf32>
    %23 = arith.maximumf %8, %22 : vector<2x128xf32>
    %24 = arith.mulf %21, %23 : vector<2x128xf32>
    %25 = arith.addf %19, %24 : vector<2x128xf32>
    %26 = vector.extract_strided_slice %3 {offsets = [1, 0, 0], sizes = [1, 2, 128], strides = [1, 1, 1]} : vector<2x2x128xf32> to vector<1x2x128xf32>
    %27 = vector.shape_cast %26 : vector<1x2x128xf32> to vector<2x128xf32>
    %cst_8 = arith.constant 0.000000e+00 : f32
    %28 = vector.broadcast %cst_8 : f32 to vector<2x128xf32>
    %29 = arith.subf %28, %8 : vector<2x128xf32>
    %cst_9 = arith.constant 0.000000e+00 : f32
    %30 = vector.broadcast %cst_9 : f32 to vector<2x128xf32>
    %31 = arith.maximumf %29, %30 : vector<2x128xf32>
    %32 = arith.mulf %27, %31 : vector<2x128xf32>
    %33 = arith.addf %25, %32 : vector<2x128xf32>
    %cst_10 = arith.constant dense<0.000000e+00> : vector<128xf32>
    %34 = vector.multi_reduction <add>, %33, %cst_10 [0] : vector<2x128xf32> to vector<128xf32>
    %35 = vector.shape_cast %34 : vector<128xf32> to vector<1x1x1x128xf32>
    %c0_11 = arith.constant 0 : index
    %c0_12 = arith.constant 0 : index
    %c0_13 = arith.constant 0 : index
    %c0_14 = arith.constant 0 : index
    %36 = vector.load %arg4[%c0_11, %c0_12, %c0_13, %c0_14] : memref<1x1x1x128xf32, #tpu.memory_space<vmem>>, vector<1x1x1x128xf32>
    tpu.vector_store %arg4[%c0_11, %c0_12, %c0_13, %c0_14], %35 {strides = array<i32>} : memref<1x1x1x128xf32, #tpu.memory_space<vmem>>, vector<1x1x1x128xf32>,
    return
  }
  func.func @transform_0(%arg0: i32, %arg1: i32) -> (i32, i32, i32, i32) {
    %c0_i32 = arith.constant 0 : i32
    %c0_i32_0 = arith.constant 0 : i32
    %c0_i32_1 = arith.constant 0 : i32
    return %arg0, %c0_i32, %arg1, %c0_i32_0 : i32, i32, i32, i32
  }
  func.func @transform_1(%arg0: i32, %arg1: i32) -> (i32, i32, i32, i32) {
    %c0_i32 = arith.constant 0 : i32
    %c0_i32_0 = arith.constant 0 : i32
    %c0_i32_1 = arith.constant 0 : i32
    return %arg0, %c0_i32, %arg1, %c0_i32_0 : i32, i32, i32, i32
  }
  func.func @transform_2(%arg0: i32, %arg1: i32) -> (i32, i32, i32, i32) {
    %c0_i32 = arith.constant 0 : i32
    %c0_i32_0 = arith.constant 0 : i32
    %c0_i32_1 = arith.constant 0 : i32
    return %arg0, %arg1, %c0_i32, %c0_i32_0 : i32, i32, i32, i32
  }
}

</mosaic_0001>

<llo_original>
// kernel: tpu_custom_call.1
$region0: #{tpu_custom_call.1}
  #allocation0 [shape = 'u32[]', space=smem, size = 0x4, offset = 0x4, fixed_abs, tag = 'smem constant byte address 0x4 - core index']
  #allocation1 [shape = 'u32[144,128]{1,0:T(1,128)}', space=vmem, size = 0x12000, scoped, tag = 'internal scratch']
  %s0 = inlined_call_operand.hbm [shape: f32[2,2,2,128], index: 0, kind: input, shape index: {}]
  %s1 = inlined_call_operand.hbm [shape: f32[2,2,2,128], index: 1, kind: input, shape index: {}]
  %s2 = inlined_call_operand.hbm [shape: f32[2,1,1,128], index: 2, kind: output, shape index: {}]
  %s3 = sld [smem:[#allocation0]]
  $region49: #{tpu_custom_call.1} parent=0
    _
  %s5 = ssub.s32 1, %s3
  %s6 = scalar_select 0, %s5, %s3
  $region1: #{tpu_custom_call.1} parent=0
    #allocation2 [shape = 'u8[4096]{0}', space=vmem, size = 0x1000, scoped, tag = 'input window, operand 0']
    #allocation3 [shape = 's32[2]{0}', space=sflag, size = 0x8, scoped, tag = 'scoped memory for tpu_custom_call.1']
    #allocation4 [shape = 's32[2]{0}', space=sflag, size = 0x8, scoped, tag = 'scoped memory for tpu_custom_call.1']
    #allocation5 [shape = 'u8[4096]{0}', space=vmem, size = 0x1000, scoped, tag = 'input window, operand 1']
    #allocation6 [shape = 's32[2]{0}', space=sflag, size = 0x8, scoped, tag = 'scoped memory for tpu_custom_call.1']
    #allocation7 [shape = 'u8[1024]{0}', space=vmem, size = 0x400, scoped, tag = 'output window, operand 0']
    %7 = vsyncpa [#allocation3], 0
    %s8 = scalar_lea.sflag [#allocation3], 1
    %9 = vsyncpa %s8, 0
    %10 = vsyncpa [#allocation6], 0
    %s11 = scalar_lea.sflag [#allocation6], 1
    %12 = vsyncpa %s11, 0
    %13 = vsyncpa [#allocation4], 0
    %s14 = scalar_lea.sflag [#allocation4], 1
    %15 = vsyncpa %s14, 0
    loop: start=0, step=1, limit=4
    $region2: #{tpu_custom_call.1} parent=1 // loop_pre_header
      _
    $region3: #{tpu_custom_call.1} parent=1 // loop_header
      %s17 = sphi 0, %s21
      %p18 = scmp.ge.s32.totalorder %s17, 4
      %s24 = sphi 0, %s36
      %s25 = sphi 0, %s32
      %s26 = sphi 0, %s24
      %s27 = sphi 0, %s25
      %s28 = sphi 0, %s26
      %s29 = sphi 0, %s27
      %s41 = sphi 0, %s43
      %s44 = sphi 0, %s41
      %s45 = sphi 0, %s44
      %s61 = sphi 0, %s45
      %s69 = sphi 0, %s71
      %s72 = sphi 0, %s69
      %s73 = sphi 0, %s72
      %s89 = sphi 0, %s73
      %s97 = sphi 0, %s99
      %s100 = sphi 0, %s97
      %s101 = sphi 0, %s100
      %s117 = sphi 0, %s101
    $region4: #{tpu_custom_call.1} parent=1 // loop_header_branch
      %20 = sbr.rel (%p18) target = $region8
    $region5: #{tpu_custom_call.1} parent=1 // loop_body
      %s22 = ssub.s32 %s17, 1
      %s23 = ssub.s32 %s17, 2
      %s30 = sadd.s32 1, %s25
      %p31 = scmp.ge.s32.totalorder %s30, 1
      %s32 = scalar_select %p31, 0, %s30
      %s33 = sadd.s32 1, %s24
      %s34 = scalar_select %p31, %s33, %s24
      %p35 = scmp.ge.s32.totalorder %s34, 2
      %s36 = scalar_select %p35, 0, %s34
      %s37 = ssub.s32 %s24, %s36
      %s38 = ssub.s32 %s25, %s32
      %s39 = sor.u32 %s37, %s38
      %p40 = scmp.eq.s32.totalorder %s39, 0
      %s42 = sadd.s32 %s41, 1
      %s43 = scalar_select %p40, %s41, %s42
      %p46 = pneg %p40
      %p47 = scmp.eq.s32.totalorder %s17, 1
      %p48 = por %p46, %p47
      %p49 = scmp.ne.s32.totalorder %s41, %s44
      %p50 = scmp.eq.s32.totalorder %s17, 0
      %p51 = por %p49, %p50
      %p52 = scmp.ne.s32.totalorder %s41, %s44
      %p53 = scmp.eq.s32.totalorder %s22, 1
      %p54 = por %p52, %p53
      %p55 = scmp.ne.s32.totalorder %s44, %s45
      %p56 = scmp.eq.s32.totalorder %s22, 0
      %p57 = por %p55, %p56
      %p58 = scmp.ne.s32.totalorder %s44, %s45
      %p59 = scmp.eq.s32.totalorder %s23, 1
      %p60 = por %p58, %p59
      %p62 = scmp.ne.s32.totalorder %s45, %s61
      %p63 = scmp.eq.s32.totalorder %s23, 0
      %p64 = por %p62, %p63
      %s65 = ssub.s32 %s24, %s36
      %s66 = ssub.s32 %s25, %s32
      %s67 = sor.u32 %s65, %s66
      %p68 = scmp.eq.s32.totalorder %s67, 0
      %s70 = sadd.s32 %s69, 1
      %s71 = scalar_select %p68, %s69, %s70
      %p74 = pneg %p68
      %p75 = scmp.eq.s32.totalorder %s17, 1
      %p76 = por %p74, %p75
      %p77 = scmp.ne.s32.totalorder %s69, %s72
      %p78 = scmp.eq.s32.totalorder %s17, 0
      %p79 = por %p77, %p78
      %p80 = scmp.ne.s32.totalorder %s69, %s72
      %p81 = scmp.eq.s32.totalorder %s22, 1
      %p82 = por %p80, %p81
      %p83 = scmp.ne.s32.totalorder %s72, %s73
      %p84 = scmp.eq.s32.totalorder %s22, 0
      %p85 = por %p83, %p84
      %p86 = scmp.ne.s32.totalorder %s72, %s73
      %p87 = scmp.eq.s32.totalorder %s23, 1
      %p88 = por %p86, %p87
      %p90 = scmp.ne.s32.totalorder %s73, %s89
      %p91 = scmp.eq.s32.totalorder %s23, 0
      %p92 = por %p90, %p91
      %s93 = ssub.s32 %s24, %s36
      %s94 = ssub.s32 %s25, %s32
      %s95 = sor.u32 %s93, %s94
      %p96 = scmp.eq.s32.totalorder %s95, 0
      %s98 = sadd.s32 %s97, 1
      %s99 = scalar_select %p96, %s97, %s98
      %p102 = pneg %p96
      %p103 = scmp.eq.s32.totalorder %s17, 1
      %p104 = por %p102, %p103
      %p105 = scmp.ne.s32.totalorder %s97, %s100
      %p106 = scmp.eq.s32.totalorder %s17, 0
      %p107 = por %p105, %p106
      %p108 = scmp.ne.s32.totalorder %s97, %s100
      %p109 = scmp.eq.s32.totalorder %s22, 1
      %p110 = por %p108, %p109
      %p111 = scmp.ne.s32.totalorder %s100, %s101
      %p112 = scmp.eq.s32.totalorder %s22, 0
      %p113 = por %p111, %p112
      %p114 = scmp.ne.s32.totalorder %s100, %s101
      %p115 = scmp.eq.s32.totalorder %s23, 1
      %p116 = por %p114, %p115
      %p118 = scmp.ne.s32.totalorder %s101, %s117
      %p119 = scmp.eq.s32.totalorder %s23, 0
      %p120 = por %p118, %p119
      %p121 = scmp.le.s32.totalorder 1, %s17
      %p122 = scmp.lt.s32.totalorder %s17, 3
      %p123 = pnand %p121, %p122
      %p124 = pneg %p123
      // Predicated region
      $region9: #{tpu_custom_call.1} parent=5 // pred_check
        _
      $region10: #{tpu_custom_call.1} parent=5 // pred_check_branch
        %126 = sbr.rel (%p123) target = $region12
      $region11: #{tpu_custom_call.1} parent=5 // pred_region
        %s127 = ssub.s32 %s17, 1
      $region12: #{tpu_custom_call.1} parent=5 // pred_fallthru
        _
      %p128 = scmp.lt.s32.totalorder %s17, 2
      // Predicated region
      $region13: #{tpu_custom_call.1} parent=5 // pred_check
        %p129 = pneg %p128
      $region14: #{tpu_custom_call.1} parent=5 // pred_check_branch
        %131 = sbr.rel (%p129) target = $region16
      $region15: #{tpu_custom_call.1} parent=5 // pred_region
        // Predicated region
        $region17: #{tpu_custom_call.1} parent=15 // pred_check
          %p132 = pneg %p51
        $region18: #{tpu_custom_call.1} parent=15 // pred_check_branch
          %134 = sbr.rel (%p132) target = $region20
        $region19: #{tpu_custom_call.1} parent=15 // pred_region
          %s135 = sand.u32 %s41, 1
          %s136 = scalar_lea.sflag [#allocation3], %s135
          %s137 = sand.u32 %s41, 1
          %s138 = smul.addr %s137, 4
          %s139 = scalar_lea.vmem [#allocation2], %s138
          %s141 = ssub.s32 64, 64
          %142 = vsyncadd %s136, %s141
          %s143 = smul.addr %s24, 2
          %s144 = sadd.s32 %s25, %s143
          %s145 = smul.addr %s144, 32
          %s146 = scalar_lea.hbm %s0, %s145
          %s147 = sshll.u32 %s139, 4
          %s148 = int_to_ptr.vmem [resolvable:$true] %s147
          %153 = dma.hbm_to_vmem [thread:$0]  %s146, 64, %s148, %s136, 32, 32, 2
        $region20: #{tpu_custom_call.1} parent=15 // pred_fallthru
          _
        // Predicated region
        $region21: #{tpu_custom_call.1} parent=15 // pred_check
          %p154 = pneg %p79
        $region22: #{tpu_custom_call.1} parent=15 // pred_check_branch
          %156 = sbr.rel (%p154) target = $region24
        $region23: #{tpu_custom_call.1} parent=15 // pred_region
          %s157 = sand.u32 %s69, 1
          %s158 = scalar_lea.sflag [#allocation6], %s157
          %s159 = sand.u32 %s69, 1
          %s160 = smul.addr %s159, 4
          %s161 = scalar_lea.vmem [#allocation5], %s160
          %s163 = ssub.s32 64, 64
          %164 = vsyncadd %s158, %s163
          %s165 = smul.addr %s24, 2
          %s166 = sadd.s32 %s25, %s165
          %s167 = smul.addr %s166, 32
          %s168 = scalar_lea.hbm %s1, %s167
          %s169 = sshll.u32 %s161, 4
          %s170 = int_to_ptr.vmem [resolvable:$true] %s169
          %175 = dma.hbm_to_vmem [thread:$0]  %s168, 64, %s170, %s158, 32, 32, 2
        $region24: #{tpu_custom_call.1} parent=15 // pred_fallthru
          _
      $region16: #{tpu_custom_call.1} parent=5 // pred_fallthru
        _
      %p176 = scmp.le.s32.totalorder 1, %s17
      %p177 = scmp.lt.s32.totalorder %s17, 3
      %p178 = pnand %p176, %p177
      %p179 = pneg %p178
      // Predicated region
      $region25: #{tpu_custom_call.1} parent=5 // pred_check
        _
      $region26: #{tpu_custom_call.1} parent=5 // pred_check_branch
        %181 = sbr.rel (%p178) target = $region28
      $region27: #{tpu_custom_call.1} parent=5 // pred_region
        %s182 = ssub.s32 %s17, 1
        %s183 = sand.u32 %s44, 1
        %s184 = scalar_lea.sflag [#allocation3], %s183
        %s185 = sand.u32 %s44, 1
        %s186 = smul.addr %s185, 4
        %s187 = scalar_lea.vmem [#allocation2], %s186
        // Predicated region
        $region29: #{tpu_custom_call.1} parent=27 // pred_check
          %p188 = pneg %p57
        $region30: #{tpu_custom_call.1} parent=27 // pred_check_branch
          %190 = sbr.rel (%p188) target = $region32
        $region31: #{tpu_custom_call.1} parent=27 // pred_region
          %191 = dma.done %s184, 64
        $region32: #{tpu_custom_call.1} parent=27 // pred_fallthru
          _
        %s192 = sand.u32 %s72, 1
        %s193 = scalar_lea.sflag [#allocation6], %s192
        %s194 = sand.u32 %s72, 1
        %s195 = smul.addr %s194, 4
        %s196 = scalar_lea.vmem [#allocation5], %s195
        // Predicated region
        $region33: #{tpu_custom_call.1} parent=27 // pred_check
          %p197 = pneg %p85
        $region34: #{tpu_custom_call.1} parent=27 // pred_check_branch
          %199 = sbr.rel (%p197) target = $region36
        $region35: #{tpu_custom_call.1} parent=27 // pred_region
          %200 = dma.done %s193, 64
        $region36: #{tpu_custom_call.1} parent=27 // pred_fallthru
          _
        %s201 = sand.u32 %s44, 1
        %s202 = scalar_lea.sflag [#allocation3], %s201
        %s203 = sand.u32 %s44, 1
        %s204 = smul.addr %s203, 4
        %s205 = scalar_lea.vmem [#allocation2], %s204
        %p206 = pneg %p57
        %p207 = pneg %p54
        %s208 = sand.u32 %s72, 1
        %s209 = scalar_lea.sflag [#allocation6], %s208
        %s210 = sand.u32 %s72, 1
        %s211 = smul.addr %s210, 4
        %s212 = scalar_lea.vmem [#allocation5], %s211
        %p213 = pneg %p85
        %p214 = pneg %p82
        %p215 = pneg %p113
        %p216 = pneg %p110
        %s217 = sand.u32 %s100, 1
        %s218 = scalar_lea.sflag [#allocation4], %s217
        %s219 = sand.u32 %s100, 1
        %s220 = scalar_lea.vmem [#allocation7], %s219
        %v221 = vld [vmem:[%s187] sm:$0x3]
        %v222 = vld [vmem:[%s187 + $0x2] sm:$0x3]
        %v223 = vld [vmem:[%s196] sm:$0x3]
        %v224 = vld [vmem:[%s196 + $0x2] sm:$0x3]
        %v225 = vsub.f32 %v222, %v221
        %v226 = vand.u32 2147483647, %v225
        %v227 = vsub.f32 0.0, %v226
        %v228 = vmul.f32 %v227, 1.442695
        %v229 = vpow.pop %v228
        %v230 = vadd.f32 %v229, 1.0
        %v231 = vlog2.pop %v230
        %v232 = vmul.f32 %v231, 0.6931472
        %v233 = vmul.f32 -0.5, %v229
        %v234 = vadd.f32 %v233, 1.0
        %v235 = vmul.f32 %v234, %v229
        %v236 = vand.u32 2147483647, %v229
        %vm237 = vcmp.lt.f32.partialorder %v236, 0.0004427343
        %v238 = vsel %vm237, %v235, %v232
        %v239 = vadd.f32 %v223, %v224
        %v240 = vmul.f32 %v239, %v238
        %v241 = vmax.f32 %v225, 0.0
        %v242 = vmul.f32 %v223, %v241
        %v243 = vadd.f32 %v240, %v242
        %v244 = vsub.f32 0.0, %v225
        %v245 = vmax.f32 %v244, 0.0
        %v246 = vmul.f32 %v224, %v245
        %v247 = vadd.f32 %v243, %v246
        %vm248 = vcmask 1041408
        %v249 = vsel %vm248, %v247, 0.0
        %v250 = vrot.slane %v249, 4
        %v251 = vadd.f32 %v249, %v250
        %v252 = vrot.slane %v251, 2
        %v253 = vadd.f32 %v251, %v252
        %v254 = vrot.slane %v253, 1
        %v255 = vadd.f32 %v253, %v254
        %256 = vst [vmem:[%s220] sm:$0x1] %v255
        %s257 = sand.u32 %s100, 1
        %s258 = scalar_lea.sflag [#allocation4], %s257
        %s259 = sand.u32 %s100, 1
        %s260 = scalar_lea.vmem [#allocation7], %s259
        // Predicated region
        $region37: #{tpu_custom_call.1} parent=27 // pred_check
          %p261 = pneg %p110
        $region38: #{tpu_custom_call.1} parent=27 // pred_check_branch
          %263 = sbr.rel (%p261) target = $region40
        $region39: #{tpu_custom_call.1} parent=27 // pred_region
          %s265 = ssub.s32 16, 16
          %266 = vsyncadd %s258, %s265
          %s267 = sadd.s32 %s27, %s26
          %s268 = smul.addr %s267, 16
          %s269 = scalar_lea.hbm %s2, %s268
          %s271 = sshll.u32 %s260, 4
          %s272 = int_to_ptr.vmem [resolvable:$true] %s271
          %274 = dma.vmem_to_hbm [thread:$0]  %s272, 16, %s269, %s258
        $region40: #{tpu_custom_call.1} parent=27 // pred_fallthru
          _
      $region28: #{tpu_custom_call.1} parent=5 // pred_fallthru
        _
      %p275 = scmp.le.s32.totalorder 2, %s17
      // Predicated region
      $region41: #{tpu_custom_call.1} parent=5 // pred_check
        %p276 = pneg %p275
      $region42: #{tpu_custom_call.1} parent=5 // pred_check_branch
        %278 = sbr.rel (%p276) target = $region44
      $region43: #{tpu_custom_call.1} parent=5 // pred_region
        %s279 = ssub.s32 %s17, 2
        // Predicated region
        $region45: #{tpu_custom_call.1} parent=43 // pred_check
          %p280 = pneg %p116
        $region46: #{tpu_custom_call.1} parent=43 // pred_check_branch
          %282 = sbr.rel (%p280) target = $region48
        $region47: #{tpu_custom_call.1} parent=43 // pred_region
          %s283 = sand.u32 %s101, 1
          %s284 = scalar_lea.sflag [#allocation4], %s283
          %s285 = sand.u32 %s101, 1
          %s286 = scalar_lea.vmem [#allocation7], %s285
          %287 = dma.done %s284, 16
        $region48: #{tpu_custom_call.1} parent=43 // pred_fallthru
          _
      $region44: #{tpu_custom_call.1} parent=5 // pred_fallthru
        _
    $region6: #{tpu_custom_call.1} parent=1 // loop_footer
      %s21 = sadd.s32 1, %s17
    $region7: #{tpu_custom_call.1} parent=1 // loop_footer_branch
      %16 = sbr.rel target = $region3
    $region8: #{tpu_custom_call.1} parent=1 // loop_exit
      _
    %288 = vsyncpa [#allocation3], 1
    %s289 = scalar_lea.sflag [#allocation3], 1
    %290 = vsyncpa %s289, 1
    %291 = vsyncpa [#allocation6], 1
    %s292 = scalar_lea.sflag [#allocation6], 1
    %293 = vsyncpa %s292, 1
    %294 = vsyncpa [#allocation4], 1
    %s295 = scalar_lea.sflag [#allocation4], 1
    %296 = vsyncpa %s295, 1

</llo_original>
